<compile_context>
chip_gen: v7x
topology: tpu7x:2x2x1
jax: 0.10.0
libtpu: 0.0.40
codegen_flags: <defaults>
</compile_context>

<pallas_src>
import functools

import jax
import jax.numpy as jnp
from jax.experimental import pallas as pl
from jax.experimental.pallas import tpu as pltpu


def _round_up(x, m):
    return ((x + m - 1) // m) * m


def _vmem_capacity_bytes():
    """Per-core VMEM capacity; conservative 64 MiB (v7x) if the query fails."""
    try:
        cap = getattr(pltpu.get_tpu_info(), "vmem_capacity_bytes", None)
        if cap:
            return int(cap)
    except Exception:
        pass
    return 64 * 1024 * 1024


def _dim_plan(n, target_tile=2048):
    """Pick a 128-aligned tile for dimension `n` and the padded extent.

    The same per-dimension tile is used when the dimension acts as the row
    axis of one rectangular matmul and the contraction axis of the other, so
    a single padded adjacency quadrant serves both calls.
    """
    n128 = _round_up(max(n, 1), 128)
    t = min(target_tile, n128)
    # Megacore balance (v7x has 2 TensorCores): prefer >=2 row tiles when the
    # dimension is big enough and halving stays 128-aligned (no extra pad).
    if t == n128 and n128 >= 256 and (n128 // 2) % 128 == 0:
        t = n128 // 2
    return t, _round_up(n128, t)


# ----------------------------------------------------------------------------
# Pallas kernel: one (row-tile, K-tile) step of out = adj @ emb
# ----------------------------------------------------------------------------
def _propagate_kernel(adj_ref, emb_ref, out_ref, acc_ref, *, tk, emb_resident):
    # adj_ref: (tm, tk)              adjacency tile (bf16 or f32)
    # emb_ref: (tk, D) streamed  or  (K_pad, D) resident in VMEM
    # out_ref: (tm, D)               acc_ref: (tm, D) f32 scratch
    k = pl.program_id(1)

    @pl.when(k == 0)
    def _init():
        acc_ref[...] = jnp.zeros_like(acc_ref)

    if emb_resident:
        start = pl.multiple_of(k * tk, tk)
        emb_blk = emb_ref[pl.ds(start, tk), :]
    else:
        emb_blk = emb_ref[...]

    # bf16 adjacency x f32 embeddings promotes to an f32 MXU matmul (only the
    # HBM-dominant adjacency stream is quantised); pure f32 stays bit-faithful.
    acc_ref[...] += jnp.dot(adj_ref[...], emb_blk,
                            preferred_element_type=jnp.float32)

    @pl.when(k == pl.num_programs(1) - 1)
    def _writeback():
        out_ref[...] = acc_ref[...].astype(out_ref.dtype)


# ----------------------------------------------------------------------------
# One rectangular (nonzero-quadrant) matmul: out = adj @ emb
# ----------------------------------------------------------------------------
def bipartite_matmul(adj, emb, *, tm, tk):
    """adj: [rows_pad, k_pad] pre-padded (tm | rows_pad, tk | k_pad),
    emb: [k_pad, D].  Returns [rows_pad, D] in emb.dtype (f32 accumulation)."""
    rows_pad, k_pad = adj.shape
    kp2, D = emb.shape
    assert kp2 == k_pad and rows_pad % tm == 0 and k_pad % tk == 0

    out_dtype = emb.dtype
    grid = (rows_pad // tm, k_pad // tk)

    adj_item = jnp.dtype(adj.dtype).itemsize
    emb_item = jnp.dtype(emb.dtype).itemsize
    out_item = jnp.dtype(out_dtype).itemsize

    # --- generation-aware VMEM budgeting -------------------------------------
    cap = _vmem_capacity_bytes()
    budget = int(cap * 0.55)                 # ~35 MiB on v7x, ~70 MiB on v5e/v6e
    fixed = (2 * tm * tk * adj_item          # double-buffered adjacency tile
             + 2 * tm * D * out_item         # double-buffered output tile
             + tm * D * 4)                   # f32 accumulator scratch
    emb_resident_bytes = 2 * k_pad * D * emb_item   # conservative: count 2 bufs
    emb_streamed_bytes = 2 * tk * D * emb_item
    emb_resident = fixed + emb_resident_bytes <= budget
    footprint = fixed + (emb_resident_bytes if emb_resident else emb_streamed_bytes)
    vmem_limit = min(int(cap * 0.9), footprint + (16 << 20))

    if emb_resident:
        # Whole embedding operand resident in VMEM, DMA'd once per call
        # (constant block index) -> no per-row-tile K-slab re-reads.
        emb_spec = pl.BlockSpec((k_pad, D), lambda i, k: (0, 0))
        emb_hbm_reads = 1
    else:
        emb_spec = pl.BlockSpec((tk, D), lambda i, k: (k, 0))
        emb_hbm_reads = grid[0]

    cost = pl.CostEstimate(
        flops=2 * rows_pad * k_pad * D,
        transcendentals=0,
        bytes_accessed=(adj.size * adj_item
                        + emb.size * emb_item * emb_hbm_reads
                        + rows_pad * D * out_item),
    )

    kernel = functools.partial(_propagate_kernel, tk=tk, emb_resident=emb_resident)

    return pl.pallas_call(
        kernel,
        out_shape=jax.ShapeDtypeStruct((rows_pad, D), out_dtype),
        grid_spec=pltpu.PrefetchScalarGridSpec(
            num_scalar_prefetch=0,
            grid=grid,
            in_specs=[
                pl.BlockSpec((tm, tk), lambda i, k: (i, k)),   # adjacency tile
                emb_spec,                                      # embedding operand
            ],
            out_specs=pl.BlockSpec((tm, D), lambda i, k: (i, 0)),
            scratch_shapes=[pltpu.VMEM((tm, D), jnp.float32)],
        ),
        compiler_params=pltpu.CompilerParams(
            dimension_semantics=("parallel", "arbitrary"),
            vmem_limit_bytes=vmem_limit,
        ),
        cost_estimate=cost,
    )(adj, emb)


# ----------------------------------------------------------------------------
# DENS_Encoder forward (glue in plain JAX, matmuls in Pallas)
# ----------------------------------------------------------------------------
def dens_encoder_forward(user_emb, item_emb, norm_adj, n_layers,
                         adj_dtype=jnp.bfloat16, target_tile=2048):
    """Faithful to DENS_Encoder.forward(); norm_adj is the dense symmetric-
    normalised bipartite adjacency (user-user / item-item quadrants zero)."""
    U, D = user_emb.shape
    I = item_emb.shape[0]

    tu, U_pad = _dim_plan(U, target_tile)
    ti, I_pad = _dim_plan(I, target_tile)

    # Hoisted one-time prep: extract the two nonzero quadrants, pad to tile
    # multiples, cast the adjacency to adj_dtype (bf16 by default).
    R = jnp.pad(norm_adj[:U, U:], ((0, U_pad - U), (0, I_pad - I))).astype(adj_dtype)
    RT = jnp.pad(norm_adj[U:, :U], ((0, I_pad - I), (0, U_pad - U))).astype(adj_dtype)

    # Embeddings stay f32 between layers (adjacency dominates HBM traffic;
    # f32 ego avoids compounding bf16 error across layers).  Padded rows of
    # the adjacency are zero, so padded embedding rows stay zero in the loop.
    ego_u = jnp.pad(user_emb, ((0, U_pad - U), (0, 0)))
    ego_i = jnp.pad(item_emb, ((0, I_pad - I), (0, 0)))

    layers_u = [ego_u]
    layers_i = [ego_i]
    for _ in range(n_layers):
        new_u = bipartite_matmul(R, ego_i, tm=tu, tk=ti)     # [U_pad, D]
        new_i = bipartite_matmul(RT, ego_u, tm=ti, tk=tu)    # [I_pad, D]
        ego_u, ego_i = new_u, new_i
        layers_u.append(ego_u)
        layers_i.append(ego_i)

    user_all = jnp.stack(layers_u, axis=1)[:U]               # [U, L+1, D]
    item_all = jnp.stack(layers_i, axis=1)[:I]               # [I, L+1, D]
    return user_all, item_all


# ----------------------------------------------------------------------------
# Deterministic parameter / graph construction
# ----------------------------------------------------------------------------
def xavier_uniform(key, shape, dtype=jnp.float32):
    fan_in, fan_out = shape[-2], shape[-1]
    limit = jnp.sqrt(6.0 / (fan_in + fan_out))
    return jax.random.uniform(key, shape, dtype, minval=-limit, maxval=limit)


def build_norm_adj(key, user_num, item_num, dtype=jnp.float32):
    """Symmetric-normalised bipartite adjacency D^-1/2 A D^-1/2 (dense)."""
    n = user_num + item_num
    r = (jax.random.uniform(key, (user_num, item_num)) < 0.3).astype(dtype)
    adj = jnp.zeros((n, n), dtype)
    adj = adj.at[:user_num, user_num:].set(r)
    adj = adj.at[user_num:, :user_num].set(r.T)
    deg = adj.sum(axis=1)
    d_inv_sqrt = jnp.where(deg > 0, 1.0 / jnp.sqrt(jnp.maximum(deg, 1e-12)), 0.0)
    return (d_inv_sqrt[:, None] * adj) * d_inv_sqrt[None, :]


if __name__ == "__main__":
    # Small shapes consistent with the module.
    user_num, item_num = 24, 40          # N = 64 total nodes
    emb_size = 128
    n_layers = 2

    key = jax.random.PRNGKey(0)
    k_u, k_i, k_adj = jax.random.split(key, 3)

    user_emb = xavier_uniform(k_u, (user_num, emb_size))
    item_emb = xavier_uniform(k_i, (item_num, emb_size))
    norm_adj = build_norm_adj(k_adj, user_num, item_num)

    # NOTE: weight_dict (wp/wu/wn/wr/bp/bn) is initialised in the PyTorch
    # module but unused in forward(); intentionally omitted.

    fwd_f32 = jax.jit(functools.partial(dens_encoder_forward, n_layers=n_layers,
                                        adj_dtype=jnp.float32))
    fwd_bf16 = jax.jit(functools.partial(dens_encoder_forward, n_layers=n_layers,
                                         adj_dtype=jnp.bfloat16))

    user_f32, item_f32 = fwd_f32(user_emb, item_emb, norm_adj)
    user_bf16, item_bf16 = fwd_bf16(user_emb, item_emb, norm_adj)
    jax.block_until_ready((user_f32, item_f32, user_bf16, item_bf16))

    # Plain-JAX reference (dense NxN matmul at HIGHEST precision, f32).
    ego = jnp.concatenate([user_emb, item_emb], axis=0)
    ref = [ego]
    for _ in range(n_layers):
        ego = jnp.matmul(norm_adj, ego, precision=jax.lax.Precision.HIGHEST)
        ref.append(ego)
    ref = jnp.stack(ref, axis=1)

    assert user_f32.shape == (user_num, n_layers + 1, emb_size)
    assert item_f32.shape == (item_num, n_layers + 1, emb_size)
    assert user_bf16.shape == (user_num, n_layers + 1, emb_size)
    assert item_bf16.shape == (item_num, n_layers + 1, emb_size)

    # f32 adjacency path: essentially bit-faithful to the f32 reference.
    assert jnp.allclose(user_f32, ref[:user_num], atol=1e-4, rtol=1e-4)
    assert jnp.allclose(item_f32, ref[user_num:], atol=1e-4, rtol=1e-4)
    # bf16 adjacency (f32 embeddings + f32 accumulation): looser tolerance.
    assert jnp.allclose(user_bf16, ref[:user_num], atol=3e-2, rtol=3e-2)
    assert jnp.allclose(item_bf16, ref[user_num:], atol=3e-2, rtol=3e-2)

    print("KERNEL_OK")
</pallas_src>

<mosaic_0001>
module attributes {stable_mosaic.version = 11 : i64} {
  func.func @_propagate_kernel(%arg0: i32, %arg1: i32, %arg2: memref<128x128xf32, #tpu.memory_space<vmem>>, %arg3: memref<128x128xf32, #tpu.memory_space<vmem>>, %arg4: memref<128x128xf32, #tpu.memory_space<vmem>>, %arg5: memref<128x128xf32, #tpu.memory_space<vmem>>) attributes {dimension_semantics = [#tpu.dimension_semantics<parallel>, #tpu.dimension_semantics<arbitrary>], iteration_bounds = array<i64: 1, 1>, scalar_prefetch = 0 : i64, scratch_operands = 1 : i64, tpu.core_type = #tpu.core_type<tc>, window_params = [{transform_indices = @transform_0, window_bounds = array<i64: 128, 128>}, {pipeline_mode = #tpu.pipeline_mode<synchronous>, transform_indices = @transform_1, window_bounds = array<i64: 128, 128>}, {transform_indices = @transform_2, window_bounds = array<i64: 128, 128>}]} {
    %c0_i32 = arith.constant 0 : i32
    %0 = arith.cmpi eq, %arg1, %c0_i32 : i32
    %1 = arith.extui %0 : i1 to i32
    %c0_i32_0 = arith.constant 0 : i32
    %2 = arith.cmpi ne, %1, %c0_i32_0 : i32
    scf.if %2 {
      %cst_9 = arith.constant 0.000000e+00 : f32
      %15 = vector.broadcast %cst_9 : f32 to vector<128x128xf32>
      %c0_10 = arith.constant 0 : index
      %c0_11 = arith.constant 0 : index
      %16 = vector.load %arg5[%c0_10, %c0_11] : memref<128x128xf32, #tpu.memory_space<vmem>>, vector<128x128xf32>
      tpu.vector_store %arg5[%c0_10, %c0_11], %15 {strides = array<i32>} : memref<128x128xf32, #tpu.memory_space<vmem>>, vector<128x128xf32>,
    } else {
    }
    %c128_i32 = arith.constant 128 : i32
    %3 = arith.muli %arg1, %c128_i32 : i32
    %4 = tpu.assume_multiple %3, 128 : i32
    %5 = arith.index_cast %4 : i32 to index
    %c0 = arith.constant 0 : index
    %6 = vector.load %arg3[%5, %c0] : memref<128x128xf32, #tpu.memory_space<vmem>>, vector<128x128xf32>
    %c0_1 = arith.constant 0 : index
    %c0_2 = arith.constant 0 : index
    %7 = vector.load %arg5[%c0_1, %c0_2] : memref<128x128xf32, #tpu.memory_space<vmem>>, vector<128x128xf32>
    %c0_3 = arith.constant 0 : index
    %c0_4 = arith.constant 0 : index
    %8 = vector.load %arg2[%c0_3, %c0_4] : memref<128x128xf32, #tpu.memory_space<vmem>>, vector<128x128xf32>
    %cst = arith.constant dense<0.000000e+00> : vector<128x128xf32>
    %9 = tpu.matmul %8, %6, %cst {dimension_numbers = #tpu.dot_dimension_numbers<[1], [0], [0], [1], [0, 0, 1, 1], [], []>} : vector<128x128xf32>, vector<128x128xf32>, vector<128x128xf32> -> vector<128x128xf32>
    %10 = arith.addf %7, %9 : vector<128x128xf32>
    %c0_5 = arith.constant 0 : index
    %c0_6 = arith.constant 0 : index
    %11 = vector.load %arg5[%c0_5, %c0_6] : memref<128x128xf32, #tpu.memory_space<vmem>>, vector<128x128xf32>
    tpu.vector_store %arg5[%c0_5, %c0_6], %10 {strides = array<i32>} : memref<128x128xf32, #tpu.memory_space<vmem>>, vector<128x128xf32>,
    %c0_i32_7 = arith.constant 0 : i32
    %12 = arith.cmpi eq, %arg1, %c0_i32_7 : i32
    %13 = arith.extui %12 : i1 to i32
    %c0_i32_8 = arith.constant 0 : i32
    %14 = arith.cmpi ne, %13, %c0_i32_8 : i32
    scf.if %14 {
      %c0_9 = arith.constant 0 : index
      %c0_10 = arith.constant 0 : index
      %15 = vector.load %arg5[%c0_9, %c0_10] : memref<128x128xf32, #tpu.memory_space<vmem>>, vector<128x128xf32>
      %c0_11 = arith.constant 0 : index
      %c0_12 = arith.constant 0 : index
      %16 = vector.load %arg4[%c0_11, %c0_12] : memref<128x128xf32, #tpu.memory_space<vmem>>, vector<128x128xf32>
      tpu.vector_store %arg4[%c0_11, %c0_12], %15 {strides = array<i32>} : memref<128x128xf32, #tpu.memory_space<vmem>>, vector<128x128xf32>,
    } else {
    }
    return
  }
  func.func @transform_0(%arg0: i32, %arg1: i32) -> (i32, i32) {
    %c0_i32 = arith.constant 0 : i32
    return %arg0, %arg1 : i32, i32
  }
  func.func @transform_1(%arg0: i32, %arg1: i32) -> (i32, i32) {
    %c0_i32 = arith.constant 0 : i32
    %c0_i32_0 = arith.constant 0 : i32
    %c0_i32_1 = arith.constant 0 : i32
    return %c0_i32, %c0_i32_0 : i32, i32
  }
  func.func @transform_2(%arg0: i32, %arg1: i32) -> (i32, i32) {
    %c0_i32 = arith.constant 0 : i32
    %c0_i32_0 = arith.constant 0 : i32
    return %arg0, %c0_i32 : i32, i32
  }
}

</mosaic_0001>

<llo_original>
// kernel: dens_encoder_forward.5
$region0: #{dens_encoder_forward.5}
  #allocation0 [shape = 'u32[]', space=smem, size = 0x4, offset = 0x4, fixed_abs, tag = 'smem constant byte address 0x4 - core index']
  #allocation1 [shape = 'u32[144,128]{1,0:T(1,128)}', space=vmem, size = 0x12000, scoped, tag = 'internal scratch']
  #allocation2 [shape = 'f32[128,128]{1,0:T(8,128)}', space=vmem, size = 0x10000, scoped, tag = 'scratch operand']
  %s0 = inlined_call_operand.vmem [shape: f32[128,128], index: 0, kind: input, shape index: {}]
  %s1 = inlined_call_operand.vmem [shape: f32[128,128], index: 1, kind: input, shape index: {}]
  %s2 = inlined_call_operand.vmem [shape: f32[128,128], index: 2, kind: output, shape index: {}]
  %s3 = sld [smem:[#allocation0]]
  $region26: #{dens_encoder_forward.5} parent=0
    _
  %s5 = ssub.s32 1, %s3
  %s6 = scalar_select 0, %s5, %s3
  // Predicated region
  $region2: #{dens_encoder_forward.5} parent=0 // pred_check
    _
  $region3: #{dens_encoder_forward.5} parent=0 // pred_check_branch
    %8 = sbr.rel (0) target = $region5
  $region4: #{dens_encoder_forward.5} parent=0 // pred_region
    _
  $region5: #{dens_encoder_forward.5} parent=0 // pred_fallthru
    _
  // Predicated region
  $region6: #{dens_encoder_forward.5} parent=0 // pred_check
    _
  $region7: #{dens_encoder_forward.5} parent=0 // pred_check_branch
    %10 = sbr.rel (0) target = $region9
  $region8: #{dens_encoder_forward.5} parent=0 // pred_region
    _
  $region9: #{dens_encoder_forward.5} parent=0 // pred_fallthru
    _
  %p11 = scmp.eq.s32.totalorder 0, 0
  // Predicated region
  $region10: #{dens_encoder_forward.5} parent=0 // pred_check
    %p12 = pneg %p11
  $region11: #{dens_encoder_forward.5} parent=0 // pred_check_branch
    %14 = sbr.rel (%p12) target = $region13
  $region12: #{dens_encoder_forward.5} parent=0 // pred_region
    %15 = vst [vmem:[#allocation2] sm:$0xff] 0.0
    %16 = vst [vmem:[#allocation2 + $0x8] sm:$0xff] 0.0
    %17 = vst [vmem:[#allocation2 + $0x10] sm:$0xff] 0.0
    %18 = vst [vmem:[#allocation2 + $0x18] sm:$0xff] 0.0
    %19 = vst [vmem:[#allocation2 + $0x20] sm:$0xff] 0.0
    %20 = vst [vmem:[#allocation2 + $0x28] sm:$0xff] 0.0
    %21 = vst [vmem:[#allocation2 + $0x30] sm:$0xff] 0.0
    %22 = vst [vmem:[#allocation2 + $0x38] sm:$0xff] 0.0
    %23 = vst [vmem:[#allocation2 + $0x40] sm:$0xff] 0.0
    %24 = vst [vmem:[#allocation2 + $0x48] sm:$0xff] 0.0
    %25 = vst [vmem:[#allocation2 + $0x50] sm:$0xff] 0.0
    %26 = vst [vmem:[#allocation2 + $0x58] sm:$0xff] 0.0
    %27 = vst [vmem:[#allocation2 + $0x60] sm:$0xff] 0.0
    %28 = vst [vmem:[#allocation2 + $0x68] sm:$0xff] 0.0
    %29 = vst [vmem:[#allocation2 + $0x70] sm:$0xff] 0.0
    %30 = vst [vmem:[#allocation2 + $0x78] sm:$0xff] 0.0
  $region13: #{dens_encoder_forward.5} parent=0 // pred_fallthru
    _
  %s31 = smul.u32 0, 128
  %s32 = scalar_lea.vmem %s1, %s31
  %v33 = vld [vmem:[%s32] sm:$0xff]
  %v34 = vld [vmem:[%s32 + $0x8] sm:$0xff]
  %v35 = vld [vmem:[%s32 + $0x10] sm:$0xff]
  %v36 = vld [vmem:[%s32 + $0x18] sm:$0xff]
  %v37 = vld [vmem:[%s32 + $0x20] sm:$0xff]
  %v38 = vld [vmem:[%s32 + $0x28] sm:$0xff]
  %v39 = vld [vmem:[%s32 + $0x30] sm:$0xff]
  %v40 = vld [vmem:[%s32 + $0x38] sm:$0xff]
  %v41 = vld [vmem:[%s32 + $0x40] sm:$0xff]
  %v42 = vld [vmem:[%s32 + $0x48] sm:$0xff]
  %v43 = vld [vmem:[%s32 + $0x50] sm:$0xff]
  %v44 = vld [vmem:[%s32 + $0x58] sm:$0xff]
  %v45 = vld [vmem:[%s32 + $0x60] sm:$0xff]
  %v46 = vld [vmem:[%s32 + $0x68] sm:$0xff]
  %v47 = vld [vmem:[%s32 + $0x70] sm:$0xff]
  %v48 = vld [vmem:[%s32 + $0x78] sm:$0xff]
  %v49 = vld [vmem:[#allocation2] sm:$0xff]
  %v50 = vld [vmem:[#allocation2 + $0x8] sm:$0xff]
  %v51 = vld [vmem:[#allocation2 + $0x10] sm:$0xff]
  %v52 = vld [vmem:[#allocation2 + $0x18] sm:$0xff]
  %v53 = vld [vmem:[#allocation2 + $0x20] sm:$0xff]
  %v54 = vld [vmem:[#allocation2 + $0x28] sm:$0xff]
  %v55 = vld [vmem:[#allocation2 + $0x30] sm:$0xff]
  %v56 = vld [vmem:[#allocation2 + $0x38] sm:$0xff]
  %v57 = vld [vmem:[#allocation2 + $0x40] sm:$0xff]
  %v58 = vld [vmem:[#allocation2 + $0x48] sm:$0xff]
  %v59 = vld [vmem:[#allocation2 + $0x50] sm:$0xff]
  %v60 = vld [vmem:[#allocation2 + $0x58] sm:$0xff]
  %v61 = vld [vmem:[#allocation2 + $0x60] sm:$0xff]
  %v62 = vld [vmem:[#allocation2 + $0x68] sm:$0xff]
  %v63 = vld [vmem:[#allocation2 + $0x70] sm:$0xff]
  %v64 = vld [vmem:[#allocation2 + $0x78] sm:$0xff]
  %v65 = vld [vmem:[%s0] sm:$0xff]
  %v66 = vld [vmem:[%s0 + $0x8] sm:$0xff]
  %v67 = vld [vmem:[%s0 + $0x10] sm:$0xff]
  %v68 = vld [vmem:[%s0 + $0x18] sm:$0xff]
  %v69 = vld [vmem:[%s0 + $0x20] sm:$0xff]
  %v70 = vld [vmem:[%s0 + $0x28] sm:$0xff]
  %v71 = vld [vmem:[%s0 + $0x30] sm:$0xff]
  %v72 = vld [vmem:[%s0 + $0x38] sm:$0xff]
  %v73 = vld [vmem:[%s0 + $0x40] sm:$0xff]
  %v74 = vld [vmem:[%s0 + $0x48] sm:$0xff]
  %v75 = vld [vmem:[%s0 + $0x50] sm:$0xff]
  %v76 = vld [vmem:[%s0 + $0x58] sm:$0xff]
  %v77 = vld [vmem:[%s0 + $0x60] sm:$0xff]
  %v78 = vld [vmem:[%s0 + $0x68] sm:$0xff]
  %v79 = vld [vmem:[%s0 + $0x70] sm:$0xff]
  %v80 = vld [vmem:[%s0 + $0x78] sm:$0xff]
  %81 = vmatprep.subr.mxu0 0.0
  %82 = vmatpush1.msra.mxu0 %v33
  %83 = vmatprep.subr.mxu0 0.0
  %84 = vmatpush1.msra.mxu0 %v34
  %85 = vmatprep.subr.mxu0 0.0
  %86 = vmatpush1.msra.mxu0 %v35
  %87 = vmatprep.subr.mxu0 0.0
  %88 = vmatpush1.msra.mxu0 %v36
  %89 = vmatprep.subr.mxu0 0.0
  %90 = vmatpush1.msra.mxu0 %v37
  %91 = vmatprep.subr.mxu0 0.0
  %92 = vmatpush1.msra.mxu0 %v38
  %93 = vmatprep.subr.mxu0 0.0
  %94 = vmatpush1.msra.mxu0 %v39
  %95 = vmatprep.subr.mxu0 0.0
  %96 = vmatpush1.msra.mxu0 %v40
  %97 = vmatprep.subr.mxu0 0.0
  %98 = vmatpush1.msra.mxu0 %v41
  %99 = vmatprep.subr.mxu0 0.0
  %100 = vmatpush1.msra.mxu0 %v42
  %101 = vmatprep.subr.mxu0 0.0
  %102 = vmatpush1.msra.mxu0 %v43
  %103 = vmatprep.subr.mxu0 0.0
  %104 = vmatpush1.msra.mxu0 %v44
  %105 = vmatprep.subr.mxu0 0.0
  %106 = vmatpush1.msra.mxu0 %v45
  %107 = vmatprep.subr.mxu0 0.0
  %108 = vmatpush1.msra.mxu0 %v46
  %109 = vmatprep.subr.mxu0 0.0
  %110 = vmatpush1.msra.mxu0 %v47
  %111 = vmatprep.subr.mxu0 0.0
  %112 = vmatpush1.msra.mxu0 %v48
  %113 = vmatprep.subr.mxu0 0.0
  %114 = vmatpush1.msra.mxu0 0.0
  %115 = vmatprep.subr.mxu0 0.0
  %116 = vmatpush1.msra.mxu0 0.0
  %117 = vmatprep.subr.mxu0 0.0
  %118 = vmatpush1.msra.mxu0 0.0
  %119 = vmatprep.subr.mxu0 0.0
  %120 = vmatpush1.msra.mxu0 0.0
  %121 = vmatprep.subr.mxu0 0.0
  %122 = vmatpush1.msra.mxu0 0.0
  %123 = vmatprep.subr.mxu0 0.0
  %124 = vmatpush1.msra.mxu0 0.0
  %125 = vmatprep.subr.mxu0 0.0
  %126 = vmatpush1.msra.mxu0 0.0
  %127 = vmatprep.subr.mxu0 0.0
  %128 = vmatpush1.msra.mxu0 0.0
  %129 = vmatprep.subr.mxu0 0.0
  %130 = vmatpush1.msra.mxu0 0.0
  %131 = vmatprep.subr.mxu0 0.0
  %132 = vmatpush1.msra.mxu0 0.0
  %133 = vmatprep.subr.mxu0 0.0
  %134 = vmatpush1.msra.mxu0 0.0
  %135 = vmatprep.subr.mxu0 0.0
  %136 = vmatpush1.msra.mxu0 0.0
  %137 = vmatprep.subr.mxu0 0.0
  %138 = vmatpush1.msra.mxu0 0.0
  %139 = vmatprep.subr.mxu0 0.0
  %140 = vmatpush1.msra.mxu0 0.0
  %141 = vmatprep.subr.mxu0 0.0
  %142 = vmatpush1.msra.mxu0 0.0
  %143 = vmatprep.subr.mxu0 0.0
  %144 = vmatpush1.msra.mxu0 0.0
  %145 = vmatprep.mubr.f32.mxu0 0.0
  %146 = vmatmul.mubr.f32.gmra.mrb[0].mxu0 %v65
  %v147 = vpop.f32.mrb[0].mxu0
  %v148 = vadd.f32 0.0, %v147
  %v149 = vpop.f32.mrb[0].mxu0
  %150 = vmatprep.mubr.f32.mxu0 0.0
  %151 = vmatmul.mubr.f32.gmra.mrb[0].mxu0 %v66
  %v152 = vpop.f32.mrb[0].mxu0
  %v153 = vadd.f32 0.0, %v152
  %v154 = vpop.f32.mrb[0].mxu0
  %155 = vmatprep.mubr.f32.mxu0 0.0
  %156 = vmatmul.mubr.f32.gmra.mrb[0].mxu0 %v67
  %v157 = vpop.f32.mrb[0].mxu0
  %v158 = vadd.f32 0.0, %v157
  %v159 = vpop.f32.mrb[0].mxu0
  %160 = vmatprep.mubr.f32.mxu0 0.0
  %161 = vmatmul.mubr.f32.gmra.mrb[0].mxu0 %v68
  %v162 = vpop.f32.mrb[0].mxu0
  %v163 = vadd.f32 0.0, %v162
  %v164 = vpop.f32.mrb[0].mxu0
  %165 = vmatprep.mubr.f32.mxu0 0.0
  %166 = vmatmul.mubr.f32.gmra.mrb[0].mxu0 %v69
  %v167 = vpop.f32.mrb[0].mxu0
  %v168 = vadd.f32 0.0, %v167
  %v169 = vpop.f32.mrb[0].mxu0
  %170 = vmatprep.mubr.f32.mxu0 0.0
  %171 = vmatmul.mubr.f32.gmra.mrb[0].mxu0 %v70
  %v172 = vpop.f32.mrb[0].mxu0
  %v173 = vadd.f32 0.0, %v172
  %v174 = vpop.f32.mrb[0].mxu0
  %175 = vmatprep.mubr.f32.mxu0 0.0
  %176 = vmatmul.mubr.f32.gmra.mrb[0].mxu0 %v71
  %v177 = vpop.f32.mrb[0].mxu0
  %v178 = vadd.f32 0.0, %v177
  %v179 = vpop.f32.mrb[0].mxu0
  %180 = vmatprep.mubr.f32.mxu0 0.0
  %181 = vmatmul.mubr.f32.gmra.mrb[0].mxu0 %v72
  %v182 = vpop.f32.mrb[0].mxu0
  %v183 = vadd.f32 0.0, %v182
  %v184 = vpop.f32.mrb[0].mxu0
  %185 = vmatprep.mubr.f32.mxu0 0.0
  %186 = vmatmul.mubr.f32.gmra.mrb[0].mxu0 %v73
  %v187 = vpop.f32.mrb[0].mxu0
  %v188 = vadd.f32 0.0, %v187
  %v189 = vpop.f32.mrb[0].mxu0
  %190 = vmatprep.mubr.f32.mxu0 0.0
  %191 = vmatmul.mubr.f32.gmra.mrb[0].mxu0 %v74
  %v192 = vpop.f32.mrb[0].mxu0
  %v193 = vadd.f32 0.0, %v192
  %v194 = vpop.f32.mrb[0].mxu0
  %195 = vmatprep.mubr.f32.mxu0 0.0
  %196 = vmatmul.mubr.f32.gmra.mrb[0].mxu0 %v75
  %v197 = vpop.f32.mrb[0].mxu0
  %v198 = vadd.f32 0.0, %v197
  %v199 = vpop.f32.mrb[0].mxu0
  %200 = vmatprep.mubr.f32.mxu0 0.0
  %201 = vmatmul.mubr.f32.gmra.mrb[0].mxu0 %v76
  %v202 = vpop.f32.mrb[0].mxu0
  %v203 = vadd.f32 0.0, %v202
  %v204 = vpop.f32.mrb[0].mxu0
  %205 = vmatprep.mubr.f32.mxu0 0.0
  %206 = vmatmul.mubr.f32.gmra.mrb[0].mxu0 %v77
  %v207 = vpop.f32.mrb[0].mxu0
  %v208 = vadd.f32 0.0, %v207
  %v209 = vpop.f32.mrb[0].mxu0
  %210 = vmatprep.mubr.f32.mxu0 0.0
  %211 = vmatmul.mubr.f32.gmra.mrb[0].mxu0 %v78
  %v212 = vpop.f32.mrb[0].mxu0
  %v213 = vadd.f32 0.0, %v212
  %v214 = vpop.f32.mrb[0].mxu0
  %215 = vmatprep.mubr.f32.mxu0 0.0
  %216 = vmatmul.mubr.f32.gmra.mrb[0].mxu0 %v79
  %v217 = vpop.f32.mrb[0].mxu0
  %v218 = vadd.f32 0.0, %v217
  %v219 = vpop.f32.mrb[0].mxu0
  %220 = vmatprep.mubr.f32.mxu0 0.0
  %221 = vmatmul.mubr.f32.gmra.mrb[0].mxu0 %v80
  %v222 = vpop.f32.mrb[0].mxu0
  %v223 = vadd.f32 0.0, %v222
  %v224 = vpop.f32.mrb[0].mxu0
  %225 = vdwg.mxu0
  %v226 = vadd.f32 %v49, %v148
  %v227 = vadd.f32 %v50, %v153
  %v228 = vadd.f32 %v51, %v158
  %v229 = vadd.f32 %v52, %v163
  %v230 = vadd.f32 %v53, %v168
  %v231 = vadd.f32 %v54, %v173
  %v232 = vadd.f32 %v55, %v178
  %v233 = vadd.f32 %v56, %v183
  %v234 = vadd.f32 %v57, %v188
  %v235 = vadd.f32 %v58, %v193
  %v236 = vadd.f32 %v59, %v198
  %v237 = vadd.f32 %v60, %v203
  %v238 = vadd.f32 %v61, %v208
  %v239 = vadd.f32 %v62, %v213
  %v240 = vadd.f32 %v63, %v218
  %v241 = vadd.f32 %v64, %v223
  %242 = vst [vmem:[#allocation2] sm:$0xff] %v226
  %243 = vst [vmem:[#allocation2 + $0x8] sm:$0xff] %v227
  %244 = vst [vmem:[#allocation2 + $0x10] sm:$0xff] %v228
  %245 = vst [vmem:[#allocation2 + $0x18] sm:$0xff] %v229
  %246 = vst [vmem:[#allocation2 + $0x20] sm:$0xff] %v230
  %247 = vst [vmem:[#allocation2 + $0x28] sm:$0xff] %v231
  %248 = vst [vmem:[#allocation2 + $0x30] sm:$0xff] %v232
  %249 = vst [vmem:[#allocation2 + $0x38] sm:$0xff] %v233
  %250 = vst [vmem:[#allocation2 + $0x40] sm:$0xff] %v234
  %251 = vst [vmem:[#allocation2 + $0x48] sm:$0xff] %v235
  %252 = vst [vmem:[#allocation2 + $0x50] sm:$0xff] %v236
  %253 = vst [vmem:[#allocation2 + $0x58] sm:$0xff] %v237
  %254 = vst [vmem:[#allocation2 + $0x60] sm:$0xff] %v238
  %255 = vst [vmem:[#allocation2 + $0x68] sm:$0xff] %v239
  %256 = vst [vmem:[#allocation2 + $0x70] sm:$0xff] %v240
  %257 = vst [vmem:[#allocation2 + $0x78] sm:$0xff] %v241
  // Predicated region
  $region14: #{dens_encoder_forward.5} parent=0 // pred_check
    %p258 = pneg %p11
  $region15: #{dens_encoder_forward.5} parent=0 // pred_check_branch
    %260 = sbr.rel (%p258) target = $region17
  $region16: #{dens_encoder_forward.5} parent=0 // pred_region
    %v261 = vld [vmem:[#allocation2] sm:$0xff]
    %v262 = vld [vmem:[#allocation2 + $0x8] sm:$0xff]
    %v263 = vld [vmem:[#allocation2 + $0x10] sm:$0xff]
    %v264 = vld [vmem:[#allocation2 + $0x18] sm:$0xff]
    %v265 = vld [vmem:[#allocation2 + $0x20] sm:$0xff]
    %v266 = vld [vmem:[#allocation2 + $0x28] sm:$0xff]
    %v267 = vld [vmem:[#allocation2 + $0x30] sm:$0xff]
    %v268 = vld [vmem:[#allocation2 + $0x38] sm:$0xff]
    %v269 = vld [vmem:[#allocation2 + $0x40] sm:$0xff]
    %v270 = vld [vmem:[#allocation2 + $0x48] sm:$0xff]
    %v271 = vld [vmem:[#allocation2 + $0x50] sm:$0xff]
    %v272 = vld [vmem:[#allocation2 + $0x58] sm:$0xff]
    %v273 = vld [vmem:[#allocation2 + $0x60] sm:$0xff]
    %v274 = vld [vmem:[#allocation2 + $0x68] sm:$0xff]
    %v275 = vld [vmem:[#allocation2 + $0x70] sm:$0xff]
    %v276 = vld [vmem:[#allocation2 + $0x78] sm:$0xff]
    %277 = vst [vmem:[%s2] sm:$0xff] %v261
    %278 = vst [vmem:[%s2 + $0x8] sm:$0xff] %v262
    %279 = vst [vmem:[%s2 + $0x10] sm:$0xff] %v263
    %280 = vst [vmem:[%s2 + $0x18] sm:$0xff] %v264
    %281 = vst [vmem:[%s2 + $0x20] sm:$0xff] %v265
    %282 = vst [vmem:[%s2 + $0x28] sm:$0xff] %v266
    %283 = vst [vmem:[%s2 + $0x30] sm:$0xff] %v267
    %284 = vst [vmem:[%s2 + $0x38] sm:$0xff] %v268
    %285 = vst [vmem:[%s2 + $0x40] sm:$0xff] %v269
    %286 = vst [vmem:[%s2 + $0x48] sm:$0xff] %v270
    %287 = vst [vmem:[%s2 + $0x50] sm:$0xff] %v271
    %288 = vst [vmem:[%s2 + $0x58] sm:$0xff] %v272
    %289 = vst [vmem:[%s2 + $0x60] sm:$0xff] %v273
    %290 = vst [vmem:[%s2 + $0x68] sm:$0xff] %v274
    %291 = vst [vmem:[%s2 + $0x70] sm:$0xff] %v275
    %292 = vst [vmem:[%s2 + $0x78] sm:$0xff] %v276
  $region17: #{dens_encoder_forward.5} parent=0 // pred_fallthru
    _
  // Predicated region
  $region18: #{dens_encoder_forward.5} parent=0 // pred_check
    _
  $region19: #{dens_encoder_forward.5} parent=0 // pred_check_branch
    %294 = sbr.rel (0) target = $region21
  $region20: #{dens_encoder_forward.5} parent=0 // pred_region
    _
  $region21: #{dens_encoder_forward.5} parent=0 // pred_fallthru
    _
  // Predicated region
  $region22: #{dens_encoder_forward.5} parent=0 // pred_check
    _
  $region23: #{dens_encoder_forward.5} parent=0 // pred_check_branch
    %296 = sbr.rel (0) target = $region25
  $region24: #{dens_encoder_forward.5} parent=0 // pred_region
    _
  $region25: #{dens_encoder_forward.5} parent=0 // pred_fallthru
    _

</llo_original>
